<compile_context>
chip_gen: v5e
topology: v5e:2x2
jax: 0.10.0
libtpu: 0.0.40
codegen_flags: <defaults>
</compile_context>

<pallas_src>
import functools

import jax
import jax.numpy as jnp
from jax.experimental import pallas as pl
from jax.experimental.pallas import tpu as pltpu

# ---- fixed-point configuration (module defaults) ---------------------------
DATA_W, DATA_F = 32, 8        # fc1 input quantization
W1_W, W1_F = 16, 8            # weight_i2h
B1_W, B1_F = 32, 8            # bias_i2h
HID_W, HID_F = 32, 2          # fc1 output / fc2 input quantization
W2_W, W2_F = 16, 8            # weight_h2o
B2_W, B2_F = 32, 8            # bias_h2o
OUT_W, OUT_F = 32, 1          # fc2 output quantization

_LANE = 128
_SUBLANE = 8
_MAX_TILE_M = 2048            # upper cap; the VMEM estimator shrinks it


def _quantize(v, width, frac_width):
    """Fixed-point quantizer (round half up, clamp, rescale) -- reference form."""
    scale = jnp.float32(2.0 ** frac_width)
    lo = jnp.float32(-(2.0 ** (width - 1)))
    hi = jnp.float32(2.0 ** (width - 1) - 1)
    q = jnp.clip(jnp.floor(v * scale + 0.5), lo, hi)
    return q / scale


def _round_up(x, m):
    return (x + m - 1) // m * m


# ----------------------------------------------------------------------------
# Kernel
# ----------------------------------------------------------------------------
def quantized_mlp_kernel(x_ref, w1_ref, b1_ref, w2_ref, b2_ref, o_ref, acc_ref,
                         *, h_chunk, n_chunks):
    """One (tile_m, Cp) row-tile of the two-layer fixed-point MLP.

    Weights arrive pre-quantized (actual fixed-point values) and resident in
    VMEM; biases arrive pre-scaled by their layer's *output* scale.  The 2^-f
    rescales of the activations are folded into the post-dot epilogues (exact
    for powers of two).  The hidden dim is processed in `h_chunk`-wide slices:
    fc1 dot + fc1 epilogue per slice, fc2 partial accumulated into acc_ref,
    fc2 epilogue once at the end.
    """
    f32 = jnp.float32
    s1 = f32(2.0 ** (HID_F - DATA_F))
    s2 = f32(2.0 ** (OUT_F - HID_F))
    dat_lo, dat_hi = f32(-(2.0 ** (DATA_W - 1))), f32(2.0 ** (DATA_W - 1) - 1)
    hid_lo, hid_hi = f32(-(2.0 ** (HID_W - 1))), f32(2.0 ** (HID_W - 1) - 1)
    out_lo, out_hi = f32(-(2.0 ** (OUT_W - 1))), f32(2.0 ** (OUT_W - 1) - 1)

    # q_in(x) kept as integer-valued floats; its 2^-DATA_F is folded into s1.
    x_int = jnp.clip(jnp.floor(x_ref[...] * f32(2.0 ** DATA_F) + 0.5),
                     dat_lo, dat_hi)

    # Static (unrolled) loop over hidden-dim chunks; static ref slices are free.
    for k in range(n_chunks):
        lo = k * h_chunk
        w1_blk = w1_ref[:, lo:lo + h_chunk]          # (Cp, h_chunk)
        b1_blk = b1_ref[:, lo:lo + h_chunk]          # (1, h_chunk)
        w2_blk = w2_ref[lo:lo + h_chunk, :]          # (h_chunk, Cp)

        acc1 = jnp.dot(x_int, w1_blk, preferred_element_type=jnp.float32)
        h_int = jnp.clip(jnp.floor(acc1 * s1 + b1_blk + 0.5), hid_lo, hid_hi)
        part = jnp.dot(h_int, w2_blk, preferred_element_type=jnp.float32)

        if k == 0:
            acc_ref[...] = part                      # avoids a zero-init pass
        else:
            acc_ref[...] += part

    # fc2 epilogue (hidden's 2^-HID_F folded into s2), then back to real scale.
    y_int = jnp.clip(jnp.floor(acc_ref[...] * s2 + b2_ref[...] + 0.5),
                     out_lo, out_hi)
    o_ref[...] = y_int * f32(2.0 ** (-OUT_F))


# ----------------------------------------------------------------------------
# Tiling / VMEM heuristics
# ----------------------------------------------------------------------------
def _vmem_caps():
    """(working-set budget, vmem_limit_bytes) derived from the actual chip."""
    cap = None
    try:
        cap = getattr(pltpu.get_tpu_info(), "vmem_capacity_bytes", None)
    except Exception:
        cap = None
    if not cap:
        cap = 64 * 1024 * 1024           # conservative fallback (v7x per-TC)
    return (int(cap) * 3) // 4, (int(cap) * 7) // 8


def _pick_h_chunk(Hp):
    """Hidden-dim chunk width: biggest of 512/256/128 that divides Hp."""
    for tk in (512, 256, 128):
        if Hp % tk == 0:
            return tk
    return Hp


def _pick_tile_m(M, Cp, Hp, tk, budget_bytes):
    """Row-tile size: as big as the VMEM budget allows, >=4 grid steps when possible."""
    def est(t):
        # resident weights/biases are still double-buffered by the pipeline
        w_res = 2 * (2 * Cp * Hp + Hp + Cp) * 4
        # double-buffered x-in and out tiles
        io = 2 * (2 * t * Cp) * 4
        # in-kernel temporaries: x_int, y_int, acc scratch (t,Cp); acc1/h_int (t,tk)
        temps = (3 * t * Cp + 2 * t * tk) * 4
        return w_res + io + temps

    tile = _MAX_TILE_M
    while tile > _SUBLANE and est(tile) > budget_bytes:
        tile //= 2
    tile = max(_SUBLANE, tile)
    tile = min(tile, _round_up(M, _SUBLANE))           # never bigger than needed
    if M >= 4 * _SUBLANE:                              # >=4 steps => >=2 per TC (v7x)
        tile = min(tile, _round_up(pl.cdiv(M, 4), _SUBLANE))
    return max(_SUBLANE, tile)


# ----------------------------------------------------------------------------
# Wrapper
# ----------------------------------------------------------------------------
def prepare_params(w1, b1, w2, b2):
    """One-time weight/bias prep (quantize, transpose, pad, pre-scale biases).

    w1: (H, C), b1: (H,), w2: (C, H), b2: (C,)  -- nn.Linear layout.
    """
    H, C = w1.shape
    Cp = _round_up(C, _LANE)
    Hp = _round_up(H, _LANE)

    # Pre-quantized weights, transposed to (in, out) for lane-dense x @ W.
    w1q = jnp.pad(_quantize(jnp.asarray(w1, jnp.float32), W1_W, W1_F).T,
                  ((0, Cp - C), (0, Hp - H)))                        # (Cp, Hp)
    w2q = jnp.pad(_quantize(jnp.asarray(w2, jnp.float32), W2_W, W2_F).T,
                  ((0, Hp - H), (0, Cp - C)))                        # (Hp, Cp)
    # Biases pre-quantized and pre-scaled by their layer's output scale so the
    # in-kernel epilogue is a single fused mul-add (exact: power-of-two scales).
    b1s = jnp.pad(_quantize(jnp.asarray(b1, jnp.float32), B1_W, B1_F)
                  * jnp.float32(2.0 ** HID_F), (0, Hp - H)).reshape(1, Hp)
    b2s = jnp.pad(_quantize(jnp.asarray(b2, jnp.float32), B2_W, B2_F)
                  * jnp.float32(2.0 ** OUT_F), (0, Cp - C)).reshape(1, Cp)
    return w1q, b1s, w2q, b2s


def _mlp_forward(x, w1q, b1s, w2q, b2s):
    """x: (B, N, C); params already prepared by prepare_params()."""
    B, N, C = x.shape
    M = B * N
    Cp, Hp = w1q.shape

    tk = _pick_h_chunk(Hp)
    n_chunks = Hp // tk
    budget, vmem_limit = _vmem_caps()
    tile_m = _pick_tile_m(M, Cp, Hp, tk, budget)
    grid_m = pl.cdiv(M, tile_m)                       # no M padding; partial last tile

    x2d = x.reshape(M, C).astype(jnp.float32)
    if Cp != C:                                       # skip pad when C % 128 == 0
        x2d = jnp.pad(x2d, ((0, 0), (0, Cp - C)))

    cost = pl.CostEstimate(
        flops=4 * M * Cp * Hp,                        # two matmuls, 2 flops/MAC
        transcendentals=0,
        bytes_accessed=4 * (2 * M * Cp + 2 * Cp * Hp + Hp + Cp),
    )

    kernel = functools.partial(quantized_mlp_kernel, h_chunk=tk, n_chunks=n_chunks)

    out2d = pl.pallas_call(
        kernel,
        out_shape=jax.ShapeDtypeStruct((M, Cp), jnp.float32),
        grid_spec=pltpu.PrefetchScalarGridSpec(
            num_scalar_prefetch=0,
            grid=(grid_m,),
            in_specs=[
                pl.BlockSpec((tile_m, Cp), lambda i: (i, 0)),   # x row tile (pipelined)
                pl.BlockSpec((Cp, Hp), lambda i: (0, 0)),       # W1 (resident)
                pl.BlockSpec((1, Hp), lambda i: (0, 0)),        # b1*2^HID_F (resident)
                pl.BlockSpec((Hp, Cp), lambda i: (0, 0)),       # W2 (resident)
                pl.BlockSpec((1, Cp), lambda i: (0, 0)),        # b2*2^OUT_F (resident)
            ],
            out_specs=pl.BlockSpec((tile_m, Cp), lambda i: (i, 0)),
            scratch_shapes=[pltpu.VMEM((tile_m, Cp), jnp.float32)],  # fc2 accumulator
        ),
        compiler_params=pltpu.CompilerParams(
            dimension_semantics=("parallel",),        # dual-TC sharding on v7x
            vmem_limit_bytes=vmem_limit,
        ),
        cost_estimate=cost,
    )(x2d, w1q, b1s, w2q, b2s)

    if Cp != C:
        out2d = out2d[:, :C]
    return out2d.reshape(B, N, C)


quantized_mlp_apply = jax.jit(_mlp_forward)


def make_quantized_mlp(w1, b1, w2, b2):
    """Prepare (and cache) the static parameters once; return x -> y forward."""
    params = jax.block_until_ready(prepare_params(w1, b1, w2, b2))

    def forward(x):
        return quantized_mlp_apply(x, *params)

    return forward


def quantized_mlp(x, w1, b1, w2, b2):
    """Convenience one-shot path (weight prep not cached across calls)."""
    return quantized_mlp_apply(x, *prepare_params(w1, b1, w2, b2))


# ----------------------------------------------------------------------------
# Reference + self-test
# ----------------------------------------------------------------------------
def _reference(x, w1, b1, w2, b2):
    """Pure-JAX reference of the same fixed-point MLP (direct translation)."""
    xq = _quantize(x, DATA_W, DATA_F)
    h = xq @ _quantize(w1, W1_W, W1_F).T + _quantize(b1, B1_W, B1_F)
    h = _quantize(h, HID_W, HID_F)
    y = h @ _quantize(w2, W2_W, W2_F).T + _quantize(b2, B2_W, B2_F)
    return _quantize(y, OUT_W, OUT_F)


if __name__ == "__main__":
    key = jax.random.PRNGKey(0)
    B, N = 2, 8                 # batch, tokens
    C, H = 32, 64               # in_features, hidden_features

    k_x, k_w1, k_b1, k_w2, k_b2 = jax.random.split(key, 5)
    x = jax.random.normal(k_x, (B, N, C), dtype=jnp.float32)
    # nn.Linear convention: weight (out_features, in_features)
    w1 = jax.random.normal(k_w1, (H, C), dtype=jnp.float32) * 0.1
    b1 = jax.random.normal(k_b1, (H,), dtype=jnp.float32) * 0.1
    w2 = jax.random.normal(k_w2, (C, H), dtype=jnp.float32) * 0.1
    b2 = jax.random.normal(k_b2, (C,), dtype=jnp.float32) * 0.1

    mlp = make_quantized_mlp(w1, b1, w2, b2)   # weight prep cached across calls
    out = jax.block_until_ready(mlp(x))

    ref = _reference(x, w1, b1, w2, b2)
    assert out.shape == (B, N, C)
    assert jnp.allclose(out, ref, atol=1e-5), "mismatch vs reference"

    print("KERNEL_OK")
</pallas_src>

<mosaic_0001>
module attributes {stable_mosaic.version = 11 : i64} {
  func.func @quantized_mlp_kernel(%arg0: i32, %arg1: memref<16x128xf32, #tpu.memory_space<vmem>>, %arg2: memref<128x128xf32, #tpu.memory_space<vmem>>, %arg3: memref<1x128xf32, #tpu.memory_space<vmem>>, %arg4: memref<128x128xf32, #tpu.memory_space<vmem>>, %arg5: memref<1x128xf32, #tpu.memory_space<vmem>>, %arg6: memref<16x128xf32, #tpu.memory_space<vmem>>, %arg7: memref<16x128xf32, #tpu.memory_space<vmem>>) attributes {dimension_semantics = [#tpu.dimension_semantics<parallel>], iteration_bounds = array<i64: 1>, scalar_prefetch = 0 : i64, scratch_operands = 1 : i64, tpu.core_type = #tpu.core_type<tc>, window_params = [{transform_indices = @transform_0, window_bounds = array<i64: 16, 128>}, {pipeline_mode = #tpu.pipeline_mode<synchronous>, transform_indices = @transform_1, window_bounds = array<i64: 128, 128>}, {pipeline_mode = #tpu.pipeline_mode<synchronous>, transform_indices = @transform_2, window_bounds = array<i64: 1, 128>}, {pipeline_mode = #tpu.pipeline_mode<synchronous>, transform_indices = @transform_3, window_bounds = array<i64: 128, 128>}, {pipeline_mode = #tpu.pipeline_mode<synchronous>, transform_indices = @transform_4, window_bounds = array<i64: 1, 128>}, {transform_indices = @transform_5, window_bounds = array<i64: 16, 128>}]} {
    %c0 = arith.constant 0 : index
    %c0_0 = arith.constant 0 : index
    %0 = vector.load %arg1[%c0, %c0_0] : memref<16x128xf32, #tpu.memory_space<vmem>>, vector<16x128xf32>
    %cst = arith.constant 2.560000e+02 : f32
    %1 = vector.broadcast %cst : f32 to vector<16x128xf32>
    %2 = arith.mulf %0, %1 : vector<16x128xf32>
    %cst_1 = arith.constant 5.000000e-01 : f32
    %3 = vector.broadcast %cst_1 : f32 to vector<16x128xf32>
    %4 = arith.addf %2, %3 : vector<16x128xf32>
    %5 = math.floor %4 : vector<16x128xf32>
    %cst_2 = arith.constant -2.14748365E+9 : f32
    %cst_3 = arith.constant 2.14748365E+9 : f32
    %6 = vector.broadcast %cst_2 : f32 to vector<16x128xf32>
    %7 = arith.maximumf %6, %5 : vector<16x128xf32>
    %8 = vector.broadcast %cst_3 : f32 to vector<16x128xf32>
    %9 = arith.minimumf %8, %7 : vector<16x128xf32>
    %c0_4 = arith.constant 0 : index
    %c0_5 = arith.constant 0 : index
    %10 = vector.load %arg2[%c0_4, %c0_5] : memref<128x128xf32, #tpu.memory_space<vmem>>, vector<128x128xf32>
    %c0_6 = arith.constant 0 : index
    %c0_7 = arith.constant 0 : index
    %11 = vector.load %arg3[%c0_6, %c0_7] : memref<1x128xf32, #tpu.memory_space<vmem>>, vector<1x128xf32>
    %c0_8 = arith.constant 0 : index
    %c0_9 = arith.constant 0 : index
    %12 = vector.load %arg4[%c0_8, %c0_9] : memref<128x128xf32, #tpu.memory_space<vmem>>, vector<128x128xf32>
    %cst_10 = arith.constant dense<0.000000e+00> : vector<16x128xf32>
    %13 = tpu.matmul %9, %10, %cst_10 {dimension_numbers = #tpu.dot_dimension_numbers<[1], [0], [0], [1], [0, 0, 1, 1], [], []>} : vector<16x128xf32>, vector<128x128xf32>, vector<16x128xf32> -> vector<16x128xf32>
    %cst_11 = arith.constant 1.562500e-02 : f32
    %14 = vector.broadcast %cst_11 : f32 to vector<16x128xf32>
    %15 = arith.mulf %13, %14 : vector<16x128xf32>
    %16 = vector.broadcast %11 : vector<1x128xf32> to vector<16x128xf32>
    %17 = arith.addf %15, %16 : vector<16x128xf32>
    %cst_12 = arith.constant 5.000000e-01 : f32
    %18 = vector.broadcast %cst_12 : f32 to vector<16x128xf32>
    %19 = arith.addf %17, %18 : vector<16x128xf32>
    %20 = math.floor %19 : vector<16x128xf32>
    %cst_13 = arith.constant -2.14748365E+9 : f32
    %cst_14 = arith.constant 2.14748365E+9 : f32
    %21 = vector.broadcast %cst_13 : f32 to vector<16x128xf32>
    %22 = arith.maximumf %21, %20 : vector<16x128xf32>
    %23 = vector.broadcast %cst_14 : f32 to vector<16x128xf32>
    %24 = arith.minimumf %23, %22 : vector<16x128xf32>
    %cst_15 = arith.constant dense<0.000000e+00> : vector<16x128xf32>
    %25 = tpu.matmul %24, %12, %cst_15 {dimension_numbers = #tpu.dot_dimension_numbers<[1], [0], [0], [1], [0, 0, 1, 1], [], []>} : vector<16x128xf32>, vector<128x128xf32>, vector<16x128xf32> -> vector<16x128xf32>
    %c0_16 = arith.constant 0 : index
    %c0_17 = arith.constant 0 : index
    %26 = vector.load %arg7[%c0_16, %c0_17] : memref<16x128xf32, #tpu.memory_space<vmem>>, vector<16x128xf32>
    tpu.vector_store %arg7[%c0_16, %c0_17], %25 {strides = array<i32>} : memref<16x128xf32, #tpu.memory_space<vmem>>, vector<16x128xf32>,
    %c0_18 = arith.constant 0 : index
    %c0_19 = arith.constant 0 : index
    %27 = vector.load %arg7[%c0_18, %c0_19] : memref<16x128xf32, #tpu.memory_space<vmem>>, vector<16x128xf32>
    %cst_20 = arith.constant 5.000000e-01 : f32
    %28 = vector.broadcast %cst_20 : f32 to vector<16x128xf32>
    %29 = arith.mulf %27, %28 : vector<16x128xf32>
    %c0_21 = arith.constant 0 : index
    %c0_22 = arith.constant 0 : index
    %30 = vector.load %arg5[%c0_21, %c0_22] : memref<1x128xf32, #tpu.memory_space<vmem>>, vector<1x128xf32>
    %31 = vector.broadcast %30 : vector<1x128xf32> to vector<16x128xf32>
    %32 = arith.addf %29, %31 : vector<16x128xf32>
    %cst_23 = arith.constant 5.000000e-01 : f32
    %33 = vector.broadcast %cst_23 : f32 to vector<16x128xf32>
    %34 = arith.addf %32, %33 : vector<16x128xf32>
    %35 = math.floor %34 : vector<16x128xf32>
    %cst_24 = arith.constant -2.14748365E+9 : f32
    %cst_25 = arith.constant 2.14748365E+9 : f32
    %36 = vector.broadcast %cst_24 : f32 to vector<16x128xf32>
    %37 = arith.maximumf %36, %35 : vector<16x128xf32>
    %38 = vector.broadcast %cst_25 : f32 to vector<16x128xf32>
    %39 = arith.minimumf %38, %37 : vector<16x128xf32>
    %cst_26 = arith.constant 5.000000e-01 : f32
    %40 = vector.broadcast %cst_26 : f32 to vector<16x128xf32>
    %41 = arith.mulf %39, %40 : vector<16x128xf32>
    %c0_27 = arith.constant 0 : index
    %c0_28 = arith.constant 0 : index
    %42 = vector.load %arg6[%c0_27, %c0_28] : memref<16x128xf32, #tpu.memory_space<vmem>>, vector<16x128xf32>
    tpu.vector_store %arg6[%c0_27, %c0_28], %41 {strides = array<i32>} : memref<16x128xf32, #tpu.memory_space<vmem>>, vector<16x128xf32>,
    return
  }
  func.func @transform_0(%arg0: i32) -> (i32, i32) {
    %c0_i32 = arith.constant 0 : i32
    %c0_i32_0 = arith.constant 0 : i32
    return %arg0, %c0_i32 : i32, i32
  }
  func.func @transform_1(%arg0: i32) -> (i32, i32) {
    %c0_i32 = arith.constant 0 : i32
    %c0_i32_0 = arith.constant 0 : i32
    %c0_i32_1 = arith.constant 0 : i32
    return %c0_i32, %c0_i32_0 : i32, i32
  }
  func.func @transform_2(%arg0: i32) -> (i32, i32) {
    %c0_i32 = arith.constant 0 : i32
    %c0_i32_0 = arith.constant 0 : i32
    %c0_i32_1 = arith.constant 0 : i32
    return %c0_i32, %c0_i32_0 : i32, i32
  }
  func.func @transform_3(%arg0: i32) -> (i32, i32) {
    %c0_i32 = arith.constant 0 : i32
    %c0_i32_0 = arith.constant 0 : i32
    %c0_i32_1 = arith.constant 0 : i32
    return %c0_i32, %c0_i32_0 : i32, i32
  }
  func.func @transform_4(%arg0: i32) -> (i32, i32) {
    %c0_i32 = arith.constant 0 : i32
    %c0_i32_0 = arith.constant 0 : i32
    %c0_i32_1 = arith.constant 0 : i32
    return %c0_i32, %c0_i32_0 : i32, i32
  }
  func.func @transform_5(%arg0: i32) -> (i32, i32) {
    %c0_i32 = arith.constant 0 : i32
    %c0_i32_0 = arith.constant 0 : i32
    return %arg0, %c0_i32 : i32, i32
  }
}

</mosaic_0001>

<llo_original>
// kernel: _mlp_forward.1
$region0: #{_mlp_forward.1}
  #allocation0 [shape = 'u32[]', space=smem, size = 0x4, offset = 0x4, fixed_abs, tag = 'smem constant byte address 0x4 - core index']
  #allocation1 [shape = 'u32[72,128]{1,0:T(1,128)}', space=vmem, size = 0x9000, scoped, tag = 'internal scratch']
  #allocation2 [shape = 'f32[16,128]{1,0:T(8,128)}', space=vmem, size = 0x2000, scoped, tag = 'scratch operand']
  %s0 = inlined_call_operand.vmem [shape: f32[16,128], index: 0, kind: input, shape index: {}]
  %s1 = inlined_call_operand.hbm [shape: f32[128,128], index: 1, kind: input, shape index: {}]
  %s2 = inlined_call_operand.vmem [shape: f32[1,128], index: 2, kind: input, shape index: {}]
  %s3 = inlined_call_operand.hbm [shape: f32[128,128], index: 3, kind: input, shape index: {}]
  %s4 = inlined_call_operand.vmem [shape: f32[1,128], index: 4, kind: input, shape index: {}]
  %s5 = inlined_call_operand.vmem [shape: f32[16,128], index: 5, kind: output, shape index: {}]
  %s6 = sld [smem:[#allocation0]]
  $region38: #{_mlp_forward.1} parent=0
    _
  %s8 = ssub.s32 1, %s6
  %s9 = scalar_select 0, %s8, %s6
  $region1: #{_mlp_forward.1} parent=0
    #allocation3 [shape = 'u8[65536]{0}', space=vmem, size = 0x10000, scoped, tag = 'input window, operand 1, single buffered']
    #allocation4 [shape = 's32[1]{0}', space=sflag, size = 0x4, scoped, tag = 'scoped memory for _mlp_forward.1']
    #allocation5 [shape = 'u8[65536]{0}', space=vmem, size = 0x10000, scoped, tag = 'input window, operand 3, single buffered']
    #allocation6 [shape = 's32[1]{0}', space=sflag, size = 0x4, scoped, tag = 'scoped memory for _mlp_forward.1']
    %10 = vsyncpa [#allocation4], 0
    %11 = vsyncpa [#allocation6], 0
    // Predicated region
    $region2: #{_mlp_forward.1} parent=1 // pred_check
      _
    $region3: #{_mlp_forward.1} parent=1 // pred_check_branch
      %13 = sbr.rel (0) target = $region5
    $region4: #{_mlp_forward.1} parent=1 // pred_region
      _
    $region5: #{_mlp_forward.1} parent=1 // pred_fallthru
      _
    // Predicated region
    $region6: #{_mlp_forward.1} parent=1 // pred_check
      _
    $region7: #{_mlp_forward.1} parent=1 // pred_check_branch
      %15 = sbr.rel (0) target = $region9
    $region8: #{_mlp_forward.1} parent=1 // pred_region
      %17 = vsyncadd [#allocation4], 0
      %s18 = sshll.u32 %s1, 4
      %s19 = int_to_ptr.hbm [resolvable:$true] %s18
      %s20 = sshll.u32 [#allocation3], 4
      %s21 = int_to_ptr.vmem [resolvable:$true] %s20
      %26 = dma.hbm_to_vmem [thread:$0]  %s19, 2048, %s21, [#allocation4], 128, 128, 8
    $region9: #{_mlp_forward.1} parent=1 // pred_fallthru
      _
    // Predicated region
    $region10: #{_mlp_forward.1} parent=1 // pred_check
      _
    $region11: #{_mlp_forward.1} parent=1 // pred_check_branch
      %28 = sbr.rel (0) target = $region13
    $region12: #{_mlp_forward.1} parent=1 // pred_region
      _
    $region13: #{_mlp_forward.1} parent=1 // pred_fallthru
      _
    // Predicated region
    $region14: #{_mlp_forward.1} parent=1 // pred_check
      _
    $region15: #{_mlp_forward.1} parent=1 // pred_check_branch
      %30 = sbr.rel (0) target = $region17
    $region16: #{_mlp_forward.1} parent=1 // pred_region
      %32 = vsyncadd [#allocation6], 0
      %s33 = sshll.u32 %s3, 4
      %s34 = int_to_ptr.hbm [resolvable:$true] %s33
      %s35 = sshll.u32 [#allocation5], 4
      %s36 = int_to_ptr.vmem [resolvable:$true] %s35
      %41 = dma.hbm_to_vmem [thread:$0]  %s34, 2048, %s36, [#allocation6], 128, 128, 8
    $region17: #{_mlp_forward.1} parent=1 // pred_fallthru
      _
    // Predicated region
    $region18: #{_mlp_forward.1} parent=1 // pred_check
      _
    $region19: #{_mlp_forward.1} parent=1 // pred_check_branch
      %43 = sbr.rel (0) target = $region21
    $region20: #{_mlp_forward.1} parent=1 // pred_region
      _
    $region21: #{_mlp_forward.1} parent=1 // pred_fallthru
      _
    // Predicated region
    $region22: #{_mlp_forward.1} parent=1 // pred_check
      _
    $region23: #{_mlp_forward.1} parent=1 // pred_check_branch
      %45 = sbr.rel (0) target = $region25
    $region24: #{_mlp_forward.1} parent=1 // pred_region
      %47 = dma.done [#allocation4], 2048
    $region25: #{_mlp_forward.1} parent=1 // pred_fallthru
      _
    // Predicated region
    $region26: #{_mlp_forward.1} parent=1 // pred_check
      _
    $region27: #{_mlp_forward.1} parent=1 // pred_check_branch
      %49 = sbr.rel (0) target = $region29
    $region28: #{_mlp_forward.1} parent=1 // pred_region
      %51 = dma.done [#allocation6], 2048
    $region29: #{_mlp_forward.1} parent=1 // pred_fallthru
      _
    %v52 = vld [vmem:[%s0] sm:$0xff]
    %v53 = vld [vmem:[%s0 + $0x8] sm:$0xff]
    %v54 = vmul.f32 %v52, 256.0
    %v55 = vmul.f32 %v53, 256.0
    %v56 = vadd.f32 %v54, 0.5
    %v57 = vadd.f32 %v55, 0.5
    %v58 = vfloor.f32 %v56
    %v59 = vfloor.f32 %v57
    %v60 = vmax.f32 %v58, -2.1474836e+09
    %v61 = vmax.f32 %v59, -2.1474836e+09
    %v62 = vmin.f32 %v60, 2.1474836e+09
    %v63 = vmin.f32 %v61, 2.1474836e+09
    %v64 = vld [vmem:[#allocation3] sm:$0xff]
    %v65 = vld [vmem:[#allocation3 + $0x8] sm:$0xff]
    %v66 = vld [vmem:[#allocation3 + $0x10] sm:$0xff]
    %v67 = vld [vmem:[#allocation3 + $0x18] sm:$0xff]
    %v68 = vld [vmem:[#allocation3 + $0x20] sm:$0xff]
    %v69 = vld [vmem:[#allocation3 + $0x28] sm:$0xff]
    %v70 = vld [vmem:[#allocation3 + $0x30] sm:$0xff]
    %v71 = vld [vmem:[#allocation3 + $0x38] sm:$0xff]
    %v72 = vld [vmem:[#allocation3 + $0x40] sm:$0xff]
    %v73 = vld [vmem:[#allocation3 + $0x48] sm:$0xff]
    %v74 = vld [vmem:[#allocation3 + $0x50] sm:$0xff]
    %v75 = vld [vmem:[#allocation3 + $0x58] sm:$0xff]
    %v76 = vld [vmem:[#allocation3 + $0x60] sm:$0xff]
    %v77 = vld [vmem:[#allocation3 + $0x68] sm:$0xff]
    %v78 = vld [vmem:[#allocation3 + $0x70] sm:$0xff]
    %v79 = vld [vmem:[#allocation3 + $0x78] sm:$0xff]
    %v80 = vld [vmem:[%s2] sm:$0x1]
    %v81 = vld [vmem:[#allocation5] sm:$0xff]
    %v82 = vld [vmem:[#allocation5 + $0x8] sm:$0xff]
    %v83 = vld [vmem:[#allocation5 + $0x10] sm:$0xff]
    %v84 = vld [vmem:[#allocation5 + $0x18] sm:$0xff]
    %v85 = vld [vmem:[#allocation5 + $0x20] sm:$0xff]
    %v86 = vld [vmem:[#allocation5 + $0x28] sm:$0xff]
    %v87 = vld [vmem:[#allocation5 + $0x30] sm:$0xff]
    %v88 = vld [vmem:[#allocation5 + $0x38] sm:$0xff]
    %v89 = vld [vmem:[#allocation5 + $0x40] sm:$0xff]
    %v90 = vld [vmem:[#allocation5 + $0x48] sm:$0xff]
    %v91 = vld [vmem:[#allocation5 + $0x50] sm:$0xff]
    %v92 = vld [vmem:[#allocation5 + $0x58] sm:$0xff]
    %v93 = vld [vmem:[#allocation5 + $0x60] sm:$0xff]
    %v94 = vld [vmem:[#allocation5 + $0x68] sm:$0xff]
    %v95 = vld [vmem:[#allocation5 + $0x70] sm:$0xff]
    %v96 = vld [vmem:[#allocation5 + $0x78] sm:$0xff]
    %97 = vmatpush.msra.mxu0 %v79
    %98 = vmatpush.msra.mxu0 %v78
    %99 = vmatpush.msra.mxu0 %v77
    %100 = vmatpush.msra.mxu0 %v76
    %101 = vmatpush.msra.mxu0 %v75
    %102 = vmatpush.msra.mxu0 %v74
    %103 = vmatpush.msra.mxu0 %v73
    %104 = vmatpush.msra.mxu0 %v72
    %105 = vmatpush.msra.mxu0 %v71
    %106 = vmatpush.msra.mxu0 %v70
    %107 = vmatpush.msra.mxu0 %v69
    %108 = vmatpush.msra.mxu0 %v68
    %109 = vmatpush.msra.mxu0 %v67
    %110 = vmatpush.msra.mxu0 %v66
    %111 = vmatpush.msra.mxu0 %v65
    %112 = vmatpush.msra.mxu0 %v64
    %113 = vmatmul.f32.gmra.mxu0 %v62
    %v114 = vpop.f32.mrf.mxu0
    %v115 = vadd.f32 0.0, %v114
    %116 = vmatmul.f32.gmra.mxu0 %v63
    %v117 = vpop.f32.mrf.mxu0
    %v118 = vadd.f32 0.0, %v117
    %119 = vdwg.mxu0
    %v120 = vmul.f32 %v115, 0.015625
    %v121 = vmul.f32 %v118, 0.015625
    %v123 = vperm.slane %v80, 0
    %v125 = vadd.f32 %v120, %v123
    %v126 = vadd.f32 %v121, %v123
    %v127 = vadd.f32 %v125, 0.5
    %v128 = vadd.f32 %v126, 0.5
    %v129 = vfloor.f32 %v127
    %v130 = vfloor.f32 %v128
    %v131 = vmax.f32 %v129, -2.1474836e+09
    %v132 = vmax.f32 %v130, -2.1474836e+09
    %v133 = vmin.f32 %v131, 2.1474836e+09
    %v134 = vmin.f32 %v132, 2.1474836e+09
    %135 = vmatpush.msra.mxu0 %v96
    %136 = vmatpush.msra.mxu0 %v95
    %137 = vmatpush.msra.mxu0 %v94
    %138 = vmatpush.msra.mxu0 %v93
    %139 = vmatpush.msra.mxu0 %v92
    %140 = vmatpush.msra.mxu0 %v91
    %141 = vmatpush.msra.mxu0 %v90
    %142 = vmatpush.msra.mxu0 %v89
    %143 = vmatpush.msra.mxu0 %v88
    %144 = vmatpush.msra.mxu0 %v87
    %145 = vmatpush.msra.mxu0 %v86
    %146 = vmatpush.msra.mxu0 %v85
    %147 = vmatpush.msra.mxu0 %v84
    %148 = vmatpush.msra.mxu0 %v83
    %149 = vmatpush.msra.mxu0 %v82
    %150 = vmatpush.msra.mxu0 %v81
    %151 = vmatmul.f32.gmra.mxu0 %v133
    %v152 = vpop.f32.mrf.mxu0
    %v153 = vadd.f32 0.0, %v152
    %154 = vmatmul.f32.gmra.mxu0 %v134
    %v155 = vpop.f32.mrf.mxu0
    %v156 = vadd.f32 0.0, %v155
    %157 = vdwg.mxu0
    %158 = vst [vmem:[#allocation2] sm:$0xff] %v153
    %159 = vst [vmem:[#allocation2 + $0x8] sm:$0xff] %v156
    %v160 = vld [vmem:[#allocation2] sm:$0xff]
    %v161 = vld [vmem:[#allocation2 + $0x8] sm:$0xff]
    %v162 = vmul.f32 %v160, 0.5
    %v163 = vmul.f32 %v161, 0.5
    %v164 = vld [vmem:[%s4] sm:$0x1]
    %v166 = vperm.slane %v164, 0
    %v168 = vadd.f32 %v162, %v166
    %v169 = vadd.f32 %v163, %v166
    %v170 = vadd.f32 %v168, 0.5
    %v171 = vadd.f32 %v169, 0.5
    %v172 = vfloor.f32 %v170
    %v173 = vfloor.f32 %v171
    %v174 = vmax.f32 %v172, -2.1474836e+09
    %v175 = vmax.f32 %v173, -2.1474836e+09
    %v176 = vmin.f32 %v174, 2.1474836e+09
    %v177 = vmin.f32 %v175, 2.1474836e+09
    %v178 = vmul.f32 %v176, 0.5
    %v179 = vmul.f32 %v177, 0.5
    %180 = vst [vmem:[%s5] sm:$0xff] %v178
    %181 = vst [vmem:[%s5 + $0x8] sm:$0xff] %v179
    // Predicated region
    $region30: #{_mlp_forward.1} parent=1 // pred_check
      _
    $region31: #{_mlp_forward.1} parent=1 // pred_check_branch
      %183 = sbr.rel (0) target = $region33
    $region32: #{_mlp_forward.1} parent=1 // pred_region
      _
    $region33: #{_mlp_forward.1} parent=1 // pred_fallthru
      _
    // Predicated region
    $region34: #{_mlp_forward.1} parent=1 // pred_check
      _
    $region35: #{_mlp_forward.1} parent=1 // pred_check_branch
      %185 = sbr.rel (0) target = $region37
    $region36: #{_mlp_forward.1} parent=1 // pred_region
      _
    $region37: #{_mlp_forward.1} parent=1 // pred_fallthru
      _
    %186 = vsyncpa [#allocation4], 1
    %187 = vsyncpa [#allocation6], 1

</llo_original>
